<compile_context>
chip_gen: v6e
topology: v6e:2x2x1
jax: 0.10.0
libtpu: 0.0.40
codegen_flags: <defaults>
</compile_context>

<pallas_src>
import functools

import jax
import jax.numpy as jnp
from jax.experimental import pallas as pl
from jax.experimental.pallas import tpu as pltpu

_LANES = 128
_SUBLANES = 8                    # f32 accumulator tile sublanes
_ROW_ALIGN = 16                  # block_rows multiple (covers f32 & bf16 tiling)
_BLOCK_BYTES = 2 * 1024 * 1024   # per-input, per-pipeline-buffer VMEM budget


def _wbce_kernel(pwm1_ref, x_ref, t_ref, o_ref, *, block_rows, rows_full,
                 rem_lanes, full_blocks, num_blocks):
    """Accumulate partial BCE sums of one (block_rows, 128) tile into o_ref."""
    i = pl.program_id(0)

    # Output block is resident across the reduction axis -> it is the accumulator.
    @pl.when(i == 0)
    def _():
        o_ref[...] = jnp.zeros_like(o_ref)

    def partial_sum(masked):
        # Widen per tile; inputs stream over HBM in their native dtype.
        x = x_ref[...].astype(jnp.float32)
        t = t_ref[...].astype(jnp.float32)
        pwm1 = pwm1_ref[0]                                # pos_weight - 1
        w = 1.0 + pwm1 * t
        # loss = pw*t*softplus(-x) + (1-t)*softplus(x)
        #      = (1-t)*x + (1 + (pw-1)*t) * softplus(-x)          [softplus id]
        # softplus(-x) = relu(-x) + log1p(exp(-|x|))  (numerically stable).
        big = (1.0 - t) * x + w * jnp.maximum(-x, 0.0)
        loss = big + w * jnp.log1p(jnp.exp(-jnp.abs(x)))
        if masked:
            # Rows past the data (ragged / OOB block padding) and lanes past the
            # last partial row are invalid.  Local indices stay small -> no
            # int32 overflow even for huge element counts.
            thresh = rows_full - i * block_rows           # scalar
            row = jax.lax.broadcasted_iota(jnp.int32, (block_rows, _LANES), 0)
            if rem_lanes:
                col = jax.lax.broadcasted_iota(jnp.int32, (block_rows, _LANES), 1)
                valid = (row < thresh) | ((row == thresh) & (col < rem_lanes))
            else:
                valid = row < thresh
            loss = jnp.where(valid, loss, 0.0)
        # Fold (block_rows,128) -> (8,128) with pure elementwise vreg adds; the
        # single cross-lane reduction is deferred to the wrapper epilogue.
        return jnp.sum(
            loss.reshape(block_rows // _SUBLANES, _SUBLANES, _LANES), axis=0)

    emit_interior = full_blocks > 0            # some blocks are fully valid
    emit_tail = full_blocks < num_blocks       # some blocks need masking

    if emit_interior and emit_tail:
        @pl.when(i < full_blocks)
        def _():
            o_ref[...] += partial_sum(masked=False)

        @pl.when(i >= full_blocks)
        def _():
            o_ref[...] += partial_sum(masked=True)
    elif emit_interior:                        # every block fully valid
        o_ref[...] += partial_sum(masked=False)
    else:                                      # every block needs the mask
        o_ref[...] += partial_sum(masked=True)


def weighted_bce_loss(inputs, targets, pos_weight=None, *, block_rows=None):
    """JAX/Pallas equivalent of WeightedBCELoss.forward (mean reduction)."""
    # Mirror the PyTorch squeeze semantics (torch .squeeze(-1) is a no-op when
    # the last dim != 1).
    if inputs.ndim >= 1 and inputs.shape[-1] == 1:
        inputs = jnp.squeeze(inputs, axis=-1)
    if targets.ndim > 1 and targets.shape[-1] == 1:
        targets = jnp.squeeze(targets, axis=-1)

    x = inputs.reshape(-1)      # native dtype; the kernel widens per tile
    t = targets.reshape(-1)
    n = int(x.shape[0])
    if int(t.shape[0]) != n:
        raise ValueError(
            f"inputs/targets element counts differ: {n} vs {int(t.shape[0])}")

    # Lane-dense (rows, 128) view.  Fast path (n % 128 == 0): pure reshape, no
    # copy.  Misaligned n pays a pad only up to the next 128-lane multiple;
    # ragged tail blocks are masked inside the kernel, never padded.
    rem_lanes = n % _LANES
    if rem_lanes:
        x = jnp.pad(x, (0, _LANES - rem_lanes))
        t = jnp.pad(t, (0, _LANES - rem_lanes))
    rows = pl.cdiv(n, _LANES)
    x2 = x.reshape(rows, _LANES)
    t2 = t.reshape(rows, _LANES)

    # Tile rows: ~2 MiB per input per pipeline buffer by default (v5e-safe,
    # >=85% of HBM roofline); always a multiple of 16 (f32 & bf16 sublane tiling).
    if block_rows is None:
        itemsize = max(x2.dtype.itemsize, t2.dtype.itemsize, 2)
        block_rows = _BLOCK_BYTES // (_LANES * itemsize)
    block_rows = max(_ROW_ALIGN,
                     _ROW_ALIGN * pl.cdiv(min(block_rows, rows), _ROW_ALIGN))
    # TODO(synk): on v6e/v7x the 32 MiB scoped-VMEM default allows 4 MiB blocks
    # (8192 rows f32 / 16384 bf16) and, on v7x, a leading CORE_PARALLEL axis
    # over the 2 TensorCores; kept generation-agnostic here.

    num_blocks = pl.cdiv(rows, block_rows)
    rows_full = n // _LANES                  # rows that are completely valid
    full_blocks = rows_full // block_rows    # blocks that need no mask

    pw = jnp.asarray(1.0 if pos_weight is None else pos_weight, jnp.float32)
    pwm1 = (pw - 1.0).reshape(1)             # SMEM scalar: pos_weight - 1

    kernel = functools.partial(
        _wbce_kernel, block_rows=block_rows, rows_full=rows_full,
        rem_lanes=rem_lanes, full_blocks=full_blocks, num_blocks=num_blocks)

    partials = pl.pallas_call(
        kernel,
        grid=(num_blocks,),
        in_specs=[
            pl.BlockSpec(memory_space=pltpu.MemorySpace.SMEM),        # pw - 1
            pl.BlockSpec((block_rows, _LANES), lambda i: (i, 0)),
            pl.BlockSpec((block_rows, _LANES), lambda i: (i, 0)),
        ],
        out_specs=pl.BlockSpec((_SUBLANES, _LANES), lambda i: (0, 0)),
        out_shape=jax.ShapeDtypeStruct((_SUBLANES, _LANES), jnp.float32),
        compiler_params=pltpu.CompilerParams(
            dimension_semantics=("arbitrary",)),
    )(pwm1, x2, t2)

    # Single cross-lane reduction + mean normalization, outside the hot loop.
    return jnp.sum(partials) / n


def _reference(inputs, targets, pos_weight=None):
    """Pure-JAX reference of F.binary_cross_entropy_with_logits (mean)."""
    if inputs.ndim >= 1 and inputs.shape[-1] == 1:
        inputs = jnp.squeeze(inputs, axis=-1)
    if targets.ndim > 1 and targets.shape[-1] == 1:
        targets = jnp.squeeze(targets, axis=-1)
    x = inputs.astype(jnp.float32).reshape(-1)
    t = targets.astype(jnp.float32).reshape(-1)
    log1p_term = jnp.log1p(jnp.exp(-jnp.abs(x)))
    sp_pos = jnp.maximum(x, 0.0) + log1p_term     # softplus(x)
    sp_neg = jnp.maximum(-x, 0.0) + log1p_term    # softplus(-x)
    pw = 1.0 if pos_weight is None else pos_weight
    return jnp.mean(pw * t * sp_neg + (1.0 - t) * sp_pos)


if __name__ == "__main__":
    key = jax.random.PRNGKey(0)
    k1, k2, k3, k4 = jax.random.split(key, 4)

    # Case 1: classic (B, 1) f32 logits / (B, 1) binary targets.  Lane-aligned
    # fast path: no pad, single ragged block, rem_lanes == 0 row mask.
    batch = 256
    logits = jax.random.normal(k1, (batch, 1), dtype=jnp.float32) * 2.0
    targets = (jax.random.uniform(k2, (batch, 1)) > 0.7).astype(jnp.float32)

    out_w = jax.block_until_ready(
        weighted_bce_loss(logits, targets, pos_weight=3.0))
    out_p = jax.block_until_ready(
        weighted_bce_loss(logits, targets, pos_weight=None))
    assert abs(float(out_w) - float(_reference(logits, targets, 3.0))) < 1e-5
    assert abs(float(out_p) - float(_reference(logits, targets, None))) < 1e-5

    # Case 2: bf16 1-D inputs, size not a multiple of 128 (misaligned path),
    # small block_rows so the reduction axis has several grid steps — exercises
    # init / interior / masked-tail branches and ragged OOB block rows.
    n2 = 5000
    logits2 = (jax.random.normal(k3, (n2,), dtype=jnp.float32) * 2.0
               ).astype(jnp.bfloat16)
    targets2 = (jax.random.uniform(k4, (n2,)) > 0.5).astype(jnp.bfloat16)

    out2 = jax.block_until_ready(
        weighted_bce_loss(logits2, targets2, pos_weight=2.5, block_rows=32))
    assert abs(float(out2) - float(_reference(logits2, targets2, 2.5))) < 2e-4

    print("KERNEL_OK")
</pallas_src>

<mosaic_0001>
module attributes {stable_mosaic.version = 11 : i64} {
  func.func @_wbce_kernel(%arg0: i32, %arg1: memref<1xf32, #tpu.memory_space<smem>>, %arg2: memref<16x128xf32, #tpu.memory_space<vmem>>, %arg3: memref<16x128xf32, #tpu.memory_space<vmem>>, %arg4: memref<8x128xf32, #tpu.memory_space<vmem>>) attributes {dimension_semantics = [#tpu.dimension_semantics<arbitrary>], iteration_bounds = array<i64: 1>, scalar_prefetch = 0 : i64, scratch_operands = 0 : i64, tpu.core_type = #tpu.core_type<tc>, window_params = [{transform_indices = @transform_0, window_bounds = array<i64: 1>}, {transform_indices = @transform_1, window_bounds = array<i64: 16, 128>}, {transform_indices = @transform_2, window_bounds = array<i64: 16, 128>}, {pipeline_mode = #tpu.pipeline_mode<synchronous>, transform_indices = @transform_3, window_bounds = array<i64: 8, 128>}]} {
    %c0_i32 = arith.constant 0 : i32
    %0 = arith.cmpi eq, %arg0, %c0_i32 : i32
    %1 = arith.extui %0 : i1 to i32
    %c0_i32_0 = arith.constant 0 : i32
    %2 = arith.cmpi ne, %1, %c0_i32_0 : i32
    scf.if %2 {
      %cst_15 = arith.constant 0.000000e+00 : f32
      %38 = vector.broadcast %cst_15 : f32 to vector<8x128xf32>
      %c0_16 = arith.constant 0 : index
      %c0_17 = arith.constant 0 : index
      %39 = vector.load %arg4[%c0_16, %c0_17] : memref<8x128xf32, #tpu.memory_space<vmem>>, vector<8x128xf32>
      tpu.vector_store %arg4[%c0_16, %c0_17], %38 {strides = array<i32>} : memref<8x128xf32, #tpu.memory_space<vmem>>, vector<8x128xf32>,
    } else {
    }
    %c0 = arith.constant 0 : index
    %c0_1 = arith.constant 0 : index
    %3 = vector.load %arg4[%c0, %c0_1] : memref<8x128xf32, #tpu.memory_space<vmem>>, vector<8x128xf32>
    %c0_2 = arith.constant 0 : index
    %c0_3 = arith.constant 0 : index
    %4 = vector.load %arg2[%c0_2, %c0_3] : memref<16x128xf32, #tpu.memory_space<vmem>>, vector<16x128xf32>
    %c0_4 = arith.constant 0 : index
    %c0_5 = arith.constant 0 : index
    %5 = vector.load %arg3[%c0_4, %c0_5] : memref<16x128xf32, #tpu.memory_space<vmem>>, vector<16x128xf32>
    %c0_6 = arith.constant 0 : index
    %6 = memref.load %arg1[%c0_6] : memref<1xf32, #tpu.memory_space<smem>>
    %7 = vector.broadcast %6 : f32 to vector<16x128xf32>
    %8 = arith.mulf %7, %5 : vector<16x128xf32>
    %cst = arith.constant 1.000000e+00 : f32
    %9 = vector.broadcast %cst : f32 to vector<16x128xf32>
    %10 = arith.addf %9, %8 : vector<16x128xf32>
    %cst_7 = arith.constant 1.000000e+00 : f32
    %11 = vector.broadcast %cst_7 : f32 to vector<16x128xf32>
    %12 = arith.subf %11, %5 : vector<16x128xf32>
    %13 = arith.mulf %12, %4 : vector<16x128xf32>
    %cst_8 = arith.constant 0.000000e+00 : f32
    %14 = vector.broadcast %cst_8 : f32 to vector<16x128xf32>
    %15 = arith.subf %14, %4 : vector<16x128xf32>
    %cst_9 = arith.constant 0.000000e+00 : f32
    %16 = vector.broadcast %cst_9 : f32 to vector<16x128xf32>
    %17 = arith.maximumf %15, %16 : vector<16x128xf32>
    %18 = arith.mulf %10, %17 : vector<16x128xf32>
    %19 = arith.addf %13, %18 : vector<16x128xf32>
    %20 = math.absf %4 : vector<16x128xf32>
    %cst_10 = arith.constant 0.000000e+00 : f32
    %21 = vector.broadcast %cst_10 : f32 to vector<16x128xf32>
    %22 = arith.subf %21, %20 : vector<16x128xf32>
    %23 = math.exp %22 : vector<16x128xf32>
    %24 = math.log1p %23 : vector<16x128xf32>
    %25 = arith.mulf %10, %24 : vector<16x128xf32>
    %26 = arith.addf %19, %25 : vector<16x128xf32>
    %c16_i32 = arith.constant 16 : i32
    %27 = arith.muli %arg0, %c16_i32 : i32
    %c2_i32 = arith.constant 2 : i32
    %28 = arith.subi %c2_i32, %27 : i32
    %29 = tpu.iota {dimensions = array<i32: 0>} : vector<16x128xi32>
    %30 = vector.broadcast %28 : i32 to vector<16x128xi32>
    %31 = arith.cmpi slt, %29, %30 : vector<16x128xi32>
    %cst_11 = arith.constant 0.000000e+00 : f32
    %32 = vector.broadcast %cst_11 : f32 to vector<16x128xf32>
    %33 = arith.select %31, %26, %32 : vector<16x128xi1>, vector<16x128xf32>
    %34 = vector.shape_cast %33 : vector<16x128xf32> to vector<2x8x128xf32>
    %cst_12 = arith.constant dense<0.000000e+00> : vector<8x128xf32>
    %35 = vector.multi_reduction <add>, %34, %cst_12 [0] : vector<2x8x128xf32> to vector<8x128xf32>
    %36 = arith.addf %3, %35 : vector<8x128xf32>
    %c0_13 = arith.constant 0 : index
    %c0_14 = arith.constant 0 : index
    %37 = vector.load %arg4[%c0_13, %c0_14] : memref<8x128xf32, #tpu.memory_space<vmem>>, vector<8x128xf32>
    tpu.vector_store %arg4[%c0_13, %c0_14], %36 {strides = array<i32>} : memref<8x128xf32, #tpu.memory_space<vmem>>, vector<8x128xf32>,
    return
  }
  func.func @transform_0(%arg0: i32) -> i32 {
    %c0_i32 = arith.constant 0 : i32
    %c0_i32_0 = arith.constant 0 : i32
    return %c0_i32 : i32
  }
  func.func @transform_1(%arg0: i32) -> (i32, i32) {
    %c0_i32 = arith.constant 0 : i32
    %c0_i32_0 = arith.constant 0 : i32
    return %arg0, %c0_i32 : i32, i32
  }
  func.func @transform_2(%arg0: i32) -> (i32, i32) {
    %c0_i32 = arith.constant 0 : i32
    %c0_i32_0 = arith.constant 0 : i32
    return %arg0, %c0_i32 : i32, i32
  }
  func.func @transform_3(%arg0: i32) -> (i32, i32) {
    %c0_i32 = arith.constant 0 : i32
    %c0_i32_0 = arith.constant 0 : i32
    %c0_i32_1 = arith.constant 0 : i32
    return %c0_i32, %c0_i32_0 : i32, i32
  }
}

</mosaic_0001>

<llo_original>
// kernel: tpu_custom_call.1
$region0: #{tpu_custom_call.1}
  #allocation0 [shape = 'u32[]', space=smem, size = 0x4, offset = 0x4, fixed_abs, tag = 'smem constant byte address 0x4 - core index']
  #allocation1 [shape = 'u32[144,128]{1,0:T(1,128)}', space=vmem, size = 0x12000, scoped, tag = 'internal scratch']
  #allocation2 [shape = 'f32[1]{0:T(128)S(6)}', space=smem, size = 0x200, scoped, tag = 'scoped memory for tpu_custom_call.1']
  %s0 = inlined_call_operand.<no memory space> [shape: f32[1], index: 0, kind: input, shape index: {}]
  %s1 = inlined_call_operand.vmem [shape: f32[2,128], index: 1, kind: input, shape index: {}]
  %s2 = inlined_call_operand.hbm [shape: f32[2,128], index: 2, kind: input, shape index: {}]
  %s3 = inlined_call_operand.hbm [shape: f32[8,128], index: 3, kind: output, shape index: {}]
  %s4 = sld [smem:[#allocation0]]
  $region30: #{tpu_custom_call.1} parent=0
    _
  %s6 = ssub.s32 1, %s4
  %s7 = scalar_select 0, %s6, %s4
  %8 = sst [smem:[#allocation2]] %s0
  $region1: #{tpu_custom_call.1} parent=0
    #allocation3 [shape = 'u8[8192]{0}', space=vmem, size = 0x2000, scoped, tag = 'input window, operand 2, single buffered']
    #allocation4 [shape = 's32[1]{0}', space=sflag, size = 0x4, scoped, tag = 'scoped memory for tpu_custom_call.1']
    #allocation5 [shape = 's32[1]{0}', space=sflag, size = 0x4, scoped, tag = 'scoped memory for tpu_custom_call.1']
    #allocation6 [shape = 'u8[4096]{0}', space=vmem, size = 0x1000, scoped, tag = 'output window, operand 0, single buffered']
    %9 = vsyncpa [#allocation4], 0
    %10 = vsyncpa [#allocation5], 0
    // Predicated region
    $region2: #{tpu_custom_call.1} parent=1 // pred_check
      _
    $region3: #{tpu_custom_call.1} parent=1 // pred_check_branch
      %12 = sbr.rel (0) target = $region5
    $region4: #{tpu_custom_call.1} parent=1 // pred_region
      _
    $region5: #{tpu_custom_call.1} parent=1 // pred_fallthru
      _
    // Predicated region
    $region6: #{tpu_custom_call.1} parent=1 // pred_check
      _
    $region7: #{tpu_custom_call.1} parent=1 // pred_check_branch
      %14 = sbr.rel (0) target = $region9
    $region8: #{tpu_custom_call.1} parent=1 // pred_region
      _
    $region9: #{tpu_custom_call.1} parent=1 // pred_fallthru
      _
    // Predicated region
    $region10: #{tpu_custom_call.1} parent=1 // pred_check
      _
    $region11: #{tpu_custom_call.1} parent=1 // pred_check_branch
      %16 = sbr.rel (0) target = $region13
    $region12: #{tpu_custom_call.1} parent=1 // pred_region
      %s18 = ssub.s32 256, 32
      %19 = vsyncadd [#allocation4], %s18
      %s20 = sshll.u32 [#allocation3], 4
      %s21 = int_to_ptr.vmem [resolvable:$true] %s20
      %26 = dma.hbm_to_vmem [thread:$0]  %s2, 32, %s21, [#allocation4], 32, 32, 2
    $region13: #{tpu_custom_call.1} parent=1 // pred_fallthru
      _
    // Predicated region
    $region14: #{tpu_custom_call.1} parent=1 // pred_check
      _
    $region15: #{tpu_custom_call.1} parent=1 // pred_check_branch
      %28 = sbr.rel (0) target = $region17
    $region16: #{tpu_custom_call.1} parent=1 // pred_region
      %29 = dma.done [#allocation4], 256
    $region17: #{tpu_custom_call.1} parent=1 // pred_fallthru
      _
    %p30 = scmp.eq.s32.totalorder 0, 0
    // Predicated region
    $region18: #{tpu_custom_call.1} parent=1 // pred_check
      %p31 = pneg %p30
    $region19: #{tpu_custom_call.1} parent=1 // pred_check_branch
      %33 = sbr.rel (%p31) target = $region21
    $region20: #{tpu_custom_call.1} parent=1 // pred_region
      %34 = vst [vmem:[#allocation6] sm:$0xff] 0.0
    $region21: #{tpu_custom_call.1} parent=1 // pred_fallthru
      _
    %v35 = vld [vmem:[#allocation6] sm:$0xff]
    %v36 = vld [vmem:[%s1] sm:$0xff]
    %v37 = vld [vmem:[%s1 + $0x8] sm:$0xff]
    %v38 = vld [vmem:[#allocation3] sm:$0xff]
    %v39 = vld [vmem:[#allocation3 + $0x8] sm:$0xff]
    %s40 = sld [smem:[#allocation2]]
    %v41 = vstv %s40
    %v42 = vmul.f32 %v41, %v38
    %v43 = vmul.f32 %v41, %v39
    %v44 = vadd.f32 %v42, 1.0
    %v45 = vadd.f32 %v43, 1.0
    %v46 = vsub.f32 1.0, %v38
    %v47 = vsub.f32 1.0, %v39
    %v48 = vmul.f32 %v46, %v36
    %v49 = vmul.f32 %v47, %v37
    %v50 = vsub.f32 0.0, %v36
    %v51 = vsub.f32 0.0, %v37
    %v52 = vmax.f32 %v50, 0.0
    %v53 = vmax.f32 %v51, 0.0
    %v54 = vmul.f32 %v44, %v52
    %v55 = vmul.f32 %v45, %v53
    %v56 = vadd.f32 %v48, %v54
    %v57 = vadd.f32 %v49, %v55
    %v58 = vand.u32 2147483647, %v36
    %v59 = vand.u32 2147483647, %v37
    %v60 = vsub.f32 0.0, %v58
    %v61 = vsub.f32 0.0, %v59
    %v62 = vmul.f32 %v60, 1.442695
    %v63 = vpow.pop %v62
    %v64 = vmul.f32 %v61, 1.442695
    %v65 = vpow.pop %v64
    %v66 = vadd.f32 %v63, 1.0
    %v67 = vlog2.pop %v66
    %v68 = vmul.f32 %v67, 0.6931472
    %v69 = vmul.f32 -0.5, %v63
    %v70 = vadd.f32 %v69, 1.0
    %v71 = vmul.f32 %v70, %v63
    %v72 = vand.u32 2147483647, %v63
    %vm73 = vcmp.lt.f32.partialorder %v72, 0.0004427343
    %v74 = vsel %vm73, %v71, %v68
    %v75 = vadd.f32 %v65, 1.0
    %v76 = vlog2.pop %v75
    %v77 = vmul.f32 %v76, 0.6931472
    %v78 = vmul.f32 -0.5, %v65
    %v79 = vadd.f32 %v78, 1.0
    %v80 = vmul.f32 %v79, %v65
    %v81 = vand.u32 2147483647, %v65
    %vm82 = vcmp.lt.f32.partialorder %v81, 0.0004427343
    %v83 = vsel %vm82, %v80, %v77
    %v84 = vmul.f32 %v44, %v74
    %v85 = vmul.f32 %v45, %v83
    %v86 = vadd.f32 %v56, %v84
    %v87 = vadd.f32 %v57, %v85
    %s88 = smul.u32 0, 16
    %s89 = ssub.s32 2, %s88
    %v90 = vlaneseq
    %v91 = vshrl.u32 %v90, 7
    %v92 = vadd.s32 %v91, 8
    %v93 = vstv %s89
    %vm94 = vcmp.lt.s32.totalorder %v91, %v93
    %vm95 = vcmp.lt.s32.totalorder %v92, %v93
    %v96 = vsel %vm94, %v86, 0.0
    %v97 = vsel %vm95, %v87, 0.0
    %v98 = vadd.f32 %v96, %v97
    %v99 = vadd.f32 %v35, %v98
    %100 = vst [vmem:[#allocation6] sm:$0xff] %v99
    // Predicated region
    $region22: #{tpu_custom_call.1} parent=1 // pred_check
      _
    $region23: #{tpu_custom_call.1} parent=1 // pred_check_branch
      %102 = sbr.rel (0) target = $region25
    $region24: #{tpu_custom_call.1} parent=1 // pred_region
      %s104 = ssub.s32 128, 128
      %105 = vsyncadd [#allocation5], %s104
      %s107 = sshll.u32 [#allocation6], 4
      %s108 = int_to_ptr.vmem [resolvable:$true] %s107
      %110 = dma.vmem_to_hbm [thread:$0]  %s108, 128, %s3, [#allocation5]
    $region25: #{tpu_custom_call.1} parent=1 // pred_fallthru
      _
    // Predicated region
    $region26: #{tpu_custom_call.1} parent=1 // pred_check
      _
    $region27: #{tpu_custom_call.1} parent=1 // pred_check_branch
      %112 = sbr.rel (0) target = $region29
    $region28: #{tpu_custom_call.1} parent=1 // pred_region
      %113 = dma.done [#allocation5], 128
    $region29: #{tpu_custom_call.1} parent=1 // pred_fallthru
      _
    %114 = vsyncpa [#allocation4], 1
    %115 = vsyncpa [#allocation5], 1

</llo_original>
